<compile_context>
chip_gen: v7x
topology: tpu7x:2x2x1
jax: 0.10.0
libtpu: 0.0.40
codegen_flags: <defaults>
</compile_context>

<pallas_src>
import functools

import jax
import jax.numpy as jnp
from jax.experimental import pallas as pl
from jax.experimental.pallas import tpu as pltpu

HIDDEN = 128          # module hidden width (from the class name / spec)
_LANE = 128
_SUBLANE = 8
_MIB = 1024 * 1024


def _round_up(x, m):
    return ((x + m - 1) // m) * m


def _elu(x):
    # F.elu with alpha=1.0.  minimum() keeps exp() from overflowing on the
    # branch where() discards (and keeps ragged-last-tile garbage rows finite).
    return jnp.where(x > 0, x, jnp.exp(jnp.minimum(x, 0.0)) - 1.0)


# ---------------------------------------------------------------------------
# Fused Pallas kernel: fc1 -> ELU -> fc2 -> ELU -> fc3
# ---------------------------------------------------------------------------
def mlp_kernel(x_ref, w1_ref, b1_ref, w2_ref, b2_ref, w3_ref, b3_ref, o_ref):
    # Matmul inputs follow the weights' dtype (f32 or bf16); accumulation,
    # bias add and ELU are always f32.
    x = x_ref[...].astype(w1_ref.dtype)
    h = jnp.dot(x, w1_ref[...], preferred_element_type=jnp.float32) + b1_ref[...]
    h = _elu(h)
    h = jnp.dot(h.astype(w2_ref.dtype), w2_ref[...],
                preferred_element_type=jnp.float32) + b2_ref[...]
    h = _elu(h)
    o_ref[...] = (jnp.dot(h.astype(w3_ref.dtype), w3_ref[...],
                          preferred_element_type=jnp.float32) + b3_ref[...])


# ---------------------------------------------------------------------------
# VMEM-aware tiling
# ---------------------------------------------------------------------------
def _vmem_budget_bytes():
    try:
        cap = pltpu.get_tpu_info().vmem_capacity_bytes
    except Exception:
        cap = 64 * _MIB  # conservative (v7x-sized) fallback
    # ~48 MiB on v7x (64 MiB physical per TC), ~96 MiB on v5e/v6e (128 MiB).
    return min(int(cap) * 3 // 4, 96 * _MIB)


def _pick_node_tile(N, F_in, C_pad, w_itemsize, vmem_budget):
    # Resident weights/biases, conservatively counted double-buffered.
    weight_bytes = 2 * ((F_in * HIDDEN + HIDDEN * HIDDEN + HIDDEN * C_pad) * w_itemsize
                        + (2 * HIDDEN + C_pad) * 4)
    # Per-node-row cost: double-buffered f32 x tile + double-buffered f32 out
    # tile + headroom for the two (tn, 128) f32 intermediates.
    bytes_per_row = 2 * F_in * 4 + 2 * C_pad * 4 + 4 * HIDDEN * 4
    avail = vmem_budget - weight_bytes - 2 * _MIB
    tn = max(avail // bytes_per_row, _SUBLANE)
    tn = (tn // _SUBLANE) * _SUBLANE
    tn = min(tn, 4096)                       # per-step work is ample well before this
    tn = min(tn, _round_up(N, _SUBLANE))     # don't over-allocate for small graphs
    return max(int(tn), _SUBLANE)


def mlp_forward(params, x, num_classes, *, matmul_dtype=jnp.float32):
    """Single fused pallas_call over node tiles. Returns [N, num_classes] f32."""
    N, F_in = x.shape
    C = num_classes
    C_pad = _round_up(C, _LANE)  # lane-dense output block (unmasked vst)

    w_dt = jnp.dtype(matmul_dtype)
    w1 = params["w1"].astype(w_dt)
    w2 = params["w2"].astype(w_dt)
    w3 = params["w3"].astype(w_dt)
    b1, b2, b3 = params["b1"], params["b2"], params["b3"]
    if C_pad != C:
        w3 = jnp.pad(w3, ((0, 0), (0, C_pad - C)))
        b3 = jnp.pad(b3, ((0, 0), (0, C_pad - C)))

    vmem_budget = _vmem_budget_bytes()
    tn = _pick_node_tile(N, F_in, C_pad, w_dt.itemsize, vmem_budget)
    # No wrapper-side pad of x: ragged last tile (OOB reads garbage but math is
    # row-wise and clamped; OOB output writes are masked by Pallas).
    grid = (pl.cdiv(N, tn),)

    out = pl.pallas_call(
        mlp_kernel,
        out_shape=jax.ShapeDtypeStruct((N, C_pad), jnp.float32),
        grid=grid,
        in_specs=[
            pl.BlockSpec((tn, F_in), lambda i: (i, 0)),        # x tile (streamed)
            pl.BlockSpec((F_in, HIDDEN), lambda i: (0, 0)),    # W1 (resident)
            pl.BlockSpec((1, HIDDEN), lambda i: (0, 0)),       # b1
            pl.BlockSpec((HIDDEN, HIDDEN), lambda i: (0, 0)),  # W2
            pl.BlockSpec((1, HIDDEN), lambda i: (0, 0)),       # b2
            pl.BlockSpec((HIDDEN, C_pad), lambda i: (0, 0)),   # W3 (lane-padded)
            pl.BlockSpec((1, C_pad), lambda i: (0, 0)),        # b3 (lane-padded)
        ],
        out_specs=pl.BlockSpec((tn, C_pad), lambda i: (i, 0)),
        compiler_params=pltpu.CompilerParams(
            dimension_semantics=("parallel",),
            vmem_limit_bytes=int(vmem_budget),
        ),
    )(x, w1, b1, w2, b2, w3, b3)

    # TODO(synk): on v7x, if a profile shows one TensorCore idle, switch the node
    # axis to pltpu.CORE_PARALLEL (or pl.core_map over create_tensorcore_mesh);
    # and add pipeline_mode=pl.Buffered(3) on the x BlockSpec if the x-tile DMA
    # is still exposed at the larger tile size.

    return out if C_pad == C else out[:, :C]


# ---------------------------------------------------------------------------
# Parameters & pure-JAX reference
# ---------------------------------------------------------------------------
def init_params(key, num_features, num_classes):
    def linear(k, f_in, f_out):
        kw, kb = jax.random.split(k)
        bound = 1.0 / jnp.sqrt(float(f_in))
        w = jax.random.uniform(kw, (f_in, f_out), jnp.float32, -bound, bound)
        b = jax.random.uniform(kb, (1, f_out), jnp.float32, -bound, bound)
        return w, b

    k1, k2, k3 = jax.random.split(key, 3)
    w1, b1 = linear(k1, num_features, HIDDEN)
    w2, b2 = linear(k2, HIDDEN, HIDDEN)
    w3, b3 = linear(k3, HIDDEN, num_classes)
    return dict(w1=w1, b1=b1, w2=w2, b2=b2, w3=w3, b3=b3)


def forward_ref(params, x):
    h = x @ params["w1"] + params["b1"]
    h = jnp.where(h > 0, h, jnp.exp(jnp.minimum(h, 0.0)) - 1.0)
    h = h @ params["w2"] + params["b2"]
    h = jnp.where(h > 0, h, jnp.exp(jnp.minimum(h, 0.0)) - 1.0)
    return h @ params["w3"] + params["b3"]


if __name__ == "__main__":
    num_nodes, num_features, num_classes = 16, 4, 4

    key = jax.random.PRNGKey(0)
    k_x, k_w, k_p = jax.random.split(key, 3)

    # Node features (data.x.float()).
    x = jax.random.normal(k_x, (num_nodes, num_features), jnp.float32)

    # Graph structure exists in `data` but is unused by GL_MLP_3l_128h's forward;
    # built only for fidelity with the spec's data object.
    src_fwd = jnp.arange(num_nodes, dtype=jnp.int32)
    dst_fwd = (src_fwd + 1) % num_nodes
    edge_index = jnp.stack([
        jnp.concatenate([src_fwd, dst_fwd]),
        jnp.concatenate([dst_fwd, src_fwd]),
    ])
    edge_weight = jax.random.uniform(
        k_w, (edge_index.shape[1],), jnp.float32, minval=0.5, maxval=1.5)
    del edge_index, edge_weight  # not used by the MLP forward

    params = init_params(k_p, num_features, num_classes)
    ref = jax.block_until_ready(forward_ref(params, x))

    # Default (f32 matmul) path — matches the PyTorch module's f32 semantics.
    fwd = jax.jit(functools.partial(mlp_forward, num_classes=num_classes))
    out = jax.block_until_ready(fwd(params, x))
    assert out.shape == (num_nodes, num_classes), out.shape
    if not jnp.allclose(out, ref, rtol=1e-3, atol=1e-3):
        raise AssertionError("Pallas f32 output does not match pure-JAX reference")

    # Optional bf16-MXU-input path (f32 accumulation) — the review's bandwidth/
    # throughput optimization; checked against the f32 reference with a looser
    # tolerance.
    fwd_bf16 = jax.jit(functools.partial(
        mlp_forward, num_classes=num_classes, matmul_dtype=jnp.bfloat16))
    out_bf16 = jax.block_until_ready(fwd_bf16(params, x))
    assert out_bf16.shape == (num_nodes, num_classes), out_bf16.shape
    if not jnp.allclose(out_bf16, ref, rtol=5e-2, atol=5e-2):
        raise AssertionError("Pallas bf16 output drifted too far from f32 reference")

    print("KERNEL_OK")
</pallas_src>

<mosaic_0001>
module attributes {stable_mosaic.version = 11 : i64} {
  func.func @mlp_kernel(%arg0: i32, %arg1: memref<16x4xf32, #tpu.memory_space<vmem>>, %arg2: memref<4x128xf32, #tpu.memory_space<vmem>>, %arg3: memref<1x128xf32, #tpu.memory_space<vmem>>, %arg4: memref<128x128xf32, #tpu.memory_space<vmem>>, %arg5: memref<1x128xf32, #tpu.memory_space<vmem>>, %arg6: memref<128x128xf32, #tpu.memory_space<vmem>>, %arg7: memref<1x128xf32, #tpu.memory_space<vmem>>, %arg8: memref<16x128xf32, #tpu.memory_space<vmem>>) attributes {dimension_semantics = [#tpu.dimension_semantics<parallel>], iteration_bounds = array<i64: 1>, scalar_prefetch = 0 : i64, scratch_operands = 0 : i64, tpu.core_type = #tpu.core_type<tc>, window_params = [{transform_indices = @transform_0, window_bounds = array<i64: 16, 4>}, {pipeline_mode = #tpu.pipeline_mode<synchronous>, transform_indices = @transform_1, window_bounds = array<i64: 4, 128>}, {pipeline_mode = #tpu.pipeline_mode<synchronous>, transform_indices = @transform_2, window_bounds = array<i64: 1, 128>}, {pipeline_mode = #tpu.pipeline_mode<synchronous>, transform_indices = @transform_3, window_bounds = array<i64: 128, 128>}, {pipeline_mode = #tpu.pipeline_mode<synchronous>, transform_indices = @transform_4, window_bounds = array<i64: 1, 128>}, {pipeline_mode = #tpu.pipeline_mode<synchronous>, transform_indices = @transform_5, window_bounds = array<i64: 128, 128>}, {pipeline_mode = #tpu.pipeline_mode<synchronous>, transform_indices = @transform_6, window_bounds = array<i64: 1, 128>}, {transform_indices = @transform_7, window_bounds = array<i64: 16, 128>}]} {
    %c0 = arith.constant 0 : index
    %c0_0 = arith.constant 0 : index
    %0 = vector.load %arg1[%c0, %c0_0] : memref<16x4xf32, #tpu.memory_space<vmem>>, vector<16x4xf32>
    %c0_1 = arith.constant 0 : index
    %c0_2 = arith.constant 0 : index
    %1 = vector.load %arg2[%c0_1, %c0_2] : memref<4x128xf32, #tpu.memory_space<vmem>>, vector<4x128xf32>
    %cst = arith.constant dense<0.000000e+00> : vector<16x128xf32>
    %2 = tpu.matmul %0, %1, %cst {dimension_numbers = #tpu.dot_dimension_numbers<[1], [0], [0], [1], [0, 0, 1, 1], [], []>} : vector<16x4xf32>, vector<4x128xf32>, vector<16x128xf32> -> vector<16x128xf32>
    %c0_3 = arith.constant 0 : index
    %c0_4 = arith.constant 0 : index
    %3 = vector.load %arg3[%c0_3, %c0_4] : memref<1x128xf32, #tpu.memory_space<vmem>>, vector<1x128xf32>
    %4 = vector.broadcast %3 : vector<1x128xf32> to vector<16x128xf32>
    %5 = arith.addf %2, %4 : vector<16x128xf32>
    %cst_5 = arith.constant 0.000000e+00 : f32
    %6 = vector.broadcast %cst_5 : f32 to vector<16x128xf32>
    %7 = arith.cmpf ogt, %5, %6 : vector<16x128xf32>
    %cst_6 = arith.constant 0.000000e+00 : f32
    %8 = vector.broadcast %cst_6 : f32 to vector<16x128xf32>
    %9 = arith.minimumf %5, %8 : vector<16x128xf32>
    %10 = math.exp %9 : vector<16x128xf32>
    %cst_7 = arith.constant 1.000000e+00 : f32
    %11 = vector.broadcast %cst_7 : f32 to vector<16x128xf32>
    %12 = arith.subf %10, %11 : vector<16x128xf32>
    %13 = arith.select %7, %5, %12 : vector<16x128xi1>, vector<16x128xf32>
    %c0_8 = arith.constant 0 : index
    %c0_9 = arith.constant 0 : index
    %14 = vector.load %arg4[%c0_8, %c0_9] : memref<128x128xf32, #tpu.memory_space<vmem>>, vector<128x128xf32>
    %cst_10 = arith.constant dense<0.000000e+00> : vector<16x128xf32>
    %15 = tpu.matmul %13, %14, %cst_10 {dimension_numbers = #tpu.dot_dimension_numbers<[1], [0], [0], [1], [0, 0, 1, 1], [], []>} : vector<16x128xf32>, vector<128x128xf32>, vector<16x128xf32> -> vector<16x128xf32>
    %c0_11 = arith.constant 0 : index
    %c0_12 = arith.constant 0 : index
    %16 = vector.load %arg5[%c0_11, %c0_12] : memref<1x128xf32, #tpu.memory_space<vmem>>, vector<1x128xf32>
    %17 = vector.broadcast %16 : vector<1x128xf32> to vector<16x128xf32>
    %18 = arith.addf %15, %17 : vector<16x128xf32>
    %cst_13 = arith.constant 0.000000e+00 : f32
    %19 = vector.broadcast %cst_13 : f32 to vector<16x128xf32>
    %20 = arith.cmpf ogt, %18, %19 : vector<16x128xf32>
    %cst_14 = arith.constant 0.000000e+00 : f32
    %21 = vector.broadcast %cst_14 : f32 to vector<16x128xf32>
    %22 = arith.minimumf %18, %21 : vector<16x128xf32>
    %23 = math.exp %22 : vector<16x128xf32>
    %cst_15 = arith.constant 1.000000e+00 : f32
    %24 = vector.broadcast %cst_15 : f32 to vector<16x128xf32>
    %25 = arith.subf %23, %24 : vector<16x128xf32>
    %26 = arith.select %20, %18, %25 : vector<16x128xi1>, vector<16x128xf32>
    %c0_16 = arith.constant 0 : index
    %c0_17 = arith.constant 0 : index
    %27 = vector.load %arg6[%c0_16, %c0_17] : memref<128x128xf32, #tpu.memory_space<vmem>>, vector<128x128xf32>
    %cst_18 = arith.constant dense<0.000000e+00> : vector<16x128xf32>
    %28 = tpu.matmul %26, %27, %cst_18 {dimension_numbers = #tpu.dot_dimension_numbers<[1], [0], [0], [1], [0, 0, 1, 1], [], []>} : vector<16x128xf32>, vector<128x128xf32>, vector<16x128xf32> -> vector<16x128xf32>
    %c0_19 = arith.constant 0 : index
    %c0_20 = arith.constant 0 : index
    %29 = vector.load %arg7[%c0_19, %c0_20] : memref<1x128xf32, #tpu.memory_space<vmem>>, vector<1x128xf32>
    %30 = vector.broadcast %29 : vector<1x128xf32> to vector<16x128xf32>
    %31 = arith.addf %28, %30 : vector<16x128xf32>
    %c0_21 = arith.constant 0 : index
    %c0_22 = arith.constant 0 : index
    %32 = vector.load %arg8[%c0_21, %c0_22] : memref<16x128xf32, #tpu.memory_space<vmem>>, vector<16x128xf32>
    tpu.vector_store %arg8[%c0_21, %c0_22], %31 {strides = array<i32>} : memref<16x128xf32, #tpu.memory_space<vmem>>, vector<16x128xf32>,
    return
  }
  func.func @transform_0(%arg0: i32) -> (i32, i32) {
    %c0_i32 = arith.constant 0 : i32
    %c0_i32_0 = arith.constant 0 : i32
    return %arg0, %c0_i32 : i32, i32
  }
  func.func @transform_1(%arg0: i32) -> (i32, i32) {
    %c0_i32 = arith.constant 0 : i32
    %c0_i32_0 = arith.constant 0 : i32
    %c0_i32_1 = arith.constant 0 : i32
    return %c0_i32, %c0_i32_0 : i32, i32
  }
  func.func @transform_2(%arg0: i32) -> (i32, i32) {
    %c0_i32 = arith.constant 0 : i32
    %c0_i32_0 = arith.constant 0 : i32
    %c0_i32_1 = arith.constant 0 : i32
    return %c0_i32, %c0_i32_0 : i32, i32
  }
  func.func @transform_3(%arg0: i32) -> (i32, i32) {
    %c0_i32 = arith.constant 0 : i32
    %c0_i32_0 = arith.constant 0 : i32
    %c0_i32_1 = arith.constant 0 : i32
    return %c0_i32, %c0_i32_0 : i32, i32
  }
  func.func @transform_4(%arg0: i32) -> (i32, i32) {
    %c0_i32 = arith.constant 0 : i32
    %c0_i32_0 = arith.constant 0 : i32
    %c0_i32_1 = arith.constant 0 : i32
    return %c0_i32, %c0_i32_0 : i32, i32
  }
  func.func @transform_5(%arg0: i32) -> (i32, i32) {
    %c0_i32 = arith.constant 0 : i32
    %c0_i32_0 = arith.constant 0 : i32
    %c0_i32_1 = arith.constant 0 : i32
    return %c0_i32, %c0_i32_0 : i32, i32
  }
  func.func @transform_6(%arg0: i32) -> (i32, i32) {
    %c0_i32 = arith.constant 0 : i32
    %c0_i32_0 = arith.constant 0 : i32
    %c0_i32_1 = arith.constant 0 : i32
    return %c0_i32, %c0_i32_0 : i32, i32
  }
  func.func @transform_7(%arg0: i32) -> (i32, i32) {
    %c0_i32 = arith.constant 0 : i32
    %c0_i32_0 = arith.constant 0 : i32
    return %arg0, %c0_i32 : i32, i32
  }
}

</mosaic_0001>

<llo_original>
// kernel: mlp_forward.1
$region0: #{mlp_forward.1}
  #allocation0 [shape = 'u32[]', space=smem, size = 0x4, offset = 0x4, fixed_abs, tag = 'smem constant byte address 0x4 - core index']
  #allocation1 [shape = 'u32[144,128]{1,0:T(1,128)}', space=vmem, size = 0x12000, scoped, tag = 'internal scratch']
  %s0 = inlined_call_operand.vmem [shape: f32[16,4], index: 0, kind: input, shape index: {}]
  %s1 = inlined_call_operand.vmem [shape: f32[4,128], index: 1, kind: input, shape index: {}]
  %s2 = inlined_call_operand.vmem [shape: f32[1,128], index: 2, kind: input, shape index: {}]
  %s3 = inlined_call_operand.vmem [shape: f32[128,128], index: 3, kind: input, shape index: {}]
  %s4 = inlined_call_operand.vmem [shape: f32[1,128], index: 4, kind: input, shape index: {}]
  %s5 = inlined_call_operand.vmem [shape: f32[128,128], index: 5, kind: input, shape index: {}]
  %s6 = inlined_call_operand.vmem [shape: f32[1,128], index: 6, kind: input, shape index: {}]
  %s7 = inlined_call_operand.vmem [shape: f32[16,128], index: 7, kind: output, shape index: {}]
  %s8 = sld [smem:[#allocation0]]
  $region38: #{mlp_forward.1} parent=0
    _
  %s10 = ssub.s32 1, %s8
  %s11 = scalar_select 0, %s10, %s8
  // Predicated region
  $region2: #{mlp_forward.1} parent=0 // pred_check
    _
  $region3: #{mlp_forward.1} parent=0 // pred_check_branch
    %13 = sbr.rel (0) target = $region5
  $region4: #{mlp_forward.1} parent=0 // pred_region
    _
  $region5: #{mlp_forward.1} parent=0 // pred_fallthru
    _
  // Predicated region
  $region6: #{mlp_forward.1} parent=0 // pred_check
    _
  $region7: #{mlp_forward.1} parent=0 // pred_check_branch
    %15 = sbr.rel (0) target = $region9
  $region8: #{mlp_forward.1} parent=0 // pred_region
    _
  $region9: #{mlp_forward.1} parent=0 // pred_fallthru
    _
  // Predicated region
  $region10: #{mlp_forward.1} parent=0 // pred_check
    _
  $region11: #{mlp_forward.1} parent=0 // pred_check_branch
    %17 = sbr.rel (0) target = $region13
  $region12: #{mlp_forward.1} parent=0 // pred_region
    _
  $region13: #{mlp_forward.1} parent=0 // pred_fallthru
    _
  // Predicated region
  $region14: #{mlp_forward.1} parent=0 // pred_check
    _
  $region15: #{mlp_forward.1} parent=0 // pred_check_branch
    %19 = sbr.rel (0) target = $region17
  $region16: #{mlp_forward.1} parent=0 // pred_region
    _
  $region17: #{mlp_forward.1} parent=0 // pred_fallthru
    _
  // Predicated region
  $region18: #{mlp_forward.1} parent=0 // pred_check
    _
  $region19: #{mlp_forward.1} parent=0 // pred_check_branch
    %21 = sbr.rel (0) target = $region21
  $region20: #{mlp_forward.1} parent=0 // pred_region
    _
  $region21: #{mlp_forward.1} parent=0 // pred_fallthru
    _
  // Predicated region
  $region22: #{mlp_forward.1} parent=0 // pred_check
    _
  $region23: #{mlp_forward.1} parent=0 // pred_check_branch
    %23 = sbr.rel (0) target = $region25
  $region24: #{mlp_forward.1} parent=0 // pred_region
    _
  $region25: #{mlp_forward.1} parent=0 // pred_fallthru
    _
  // Predicated region
  $region26: #{mlp_forward.1} parent=0 // pred_check
    _
  $region27: #{mlp_forward.1} parent=0 // pred_check_branch
    %25 = sbr.rel (0) target = $region29
  $region28: #{mlp_forward.1} parent=0 // pred_region
    _
  $region29: #{mlp_forward.1} parent=0 // pred_fallthru
    _
  %v26 = vld [vmem:[%s0] sm:$0xff]
  %v27 = vld [vmem:[%s0 + $0x8] sm:$0xff]
  %v28 = vld [vmem:[%s1] sm:$0xf]
  %v29 = vld [vmem:[%s2] sm:$0x1]
  %v31 = vlaneseq
  %v32 = vshrl.u32 %v31, 7
  %v33 = vsub.s32 0, %v32
  %v34 = vrot.slane %v29, %v33
  %vm36 = vcmask 31744
  %v38 = vsel %vm36, %v26, 0
  %v41 = vsel %vm36, %v27, 0
  %vm43 = vcmask 1043456
  %v45 = vsel %vm43, %v28, 0
  %47 = vmatprep.subr.mxu0 0.0
  %48 = vmatpush1.msra.mxu0 %v45
  %49 = vmatprep.subr.mxu0 0.0
  %50 = vmatpush1.msra.mxu0 0.0
  %51 = vmatprep.subr.mxu0 0.0
  %52 = vmatpush1.msra.mxu0 0.0
  %53 = vmatprep.subr.mxu0 0.0
  %54 = vmatpush1.msra.mxu0 0.0
  %55 = vmatprep.subr.mxu0 0.0
  %56 = vmatpush1.msra.mxu0 0.0
  %57 = vmatprep.subr.mxu0 0.0
  %58 = vmatpush1.msra.mxu0 0.0
  %59 = vmatprep.subr.mxu0 0.0
  %60 = vmatpush1.msra.mxu0 0.0
  %61 = vmatprep.subr.mxu0 0.0
  %62 = vmatpush1.msra.mxu0 0.0
  %63 = vmatprep.subr.mxu0 0.0
  %64 = vmatpush1.msra.mxu0 0.0
  %65 = vmatprep.subr.mxu0 0.0
  %66 = vmatpush1.msra.mxu0 0.0
  %67 = vmatprep.subr.mxu0 0.0
  %68 = vmatpush1.msra.mxu0 0.0
  %69 = vmatprep.subr.mxu0 0.0
  %70 = vmatpush1.msra.mxu0 0.0
  %71 = vmatprep.subr.mxu0 0.0
  %72 = vmatpush1.msra.mxu0 0.0
  %73 = vmatprep.subr.mxu0 0.0
  %74 = vmatpush1.msra.mxu0 0.0
  %75 = vmatprep.subr.mxu0 0.0
  %76 = vmatpush1.msra.mxu0 0.0
  %77 = vmatprep.subr.mxu0 0.0
  %78 = vmatpush1.msra.mxu0 0.0
  %79 = vmatprep.subr.mxu0 0.0
  %80 = vmatpush1.msra.mxu0 0.0
  %81 = vmatprep.subr.mxu0 0.0
  %82 = vmatpush1.msra.mxu0 0.0
  %83 = vmatprep.subr.mxu0 0.0
  %84 = vmatpush1.msra.mxu0 0.0
  %85 = vmatprep.subr.mxu0 0.0
  %86 = vmatpush1.msra.mxu0 0.0
  %87 = vmatprep.subr.mxu0 0.0
  %88 = vmatpush1.msra.mxu0 0.0
  %89 = vmatprep.subr.mxu0 0.0
  %90 = vmatpush1.msra.mxu0 0.0
  %91 = vmatprep.subr.mxu0 0.0
  %92 = vmatpush1.msra.mxu0 0.0
  %93 = vmatprep.subr.mxu0 0.0
  %94 = vmatpush1.msra.mxu0 0.0
  %95 = vmatprep.subr.mxu0 0.0
  %96 = vmatpush1.msra.mxu0 0.0
  %97 = vmatprep.subr.mxu0 0.0
  %98 = vmatpush1.msra.mxu0 0.0
  %99 = vmatprep.subr.mxu0 0.0
  %100 = vmatpush1.msra.mxu0 0.0
  %101 = vmatprep.subr.mxu0 0.0
  %102 = vmatpush1.msra.mxu0 0.0
  %103 = vmatprep.subr.mxu0 0.0
  %104 = vmatpush1.msra.mxu0 0.0
  %105 = vmatprep.subr.mxu0 0.0
  %106 = vmatpush1.msra.mxu0 0.0
  %107 = vmatprep.subr.mxu0 0.0
  %108 = vmatpush1.msra.mxu0 0.0
  %109 = vmatprep.subr.mxu0 0.0
  %110 = vmatpush1.msra.mxu0 0.0
  %111 = vmatprep.mubr.f32.mxu0 0.0
  %112 = vmatmul.mubr.f32.gmra.mrb[0].mxu0 %v38
  %v113 = vpop.f32.mrb[0].mxu0
  %v114 = vadd.f32 %v34, %v113
  %v115 = vpop.f32.mrb[0].mxu0
  %116 = vmatprep.mubr.f32.mxu0 0.0
  %117 = vmatmul.mubr.f32.gmra.mrb[0].mxu0 %v41
  %v118 = vpop.f32.mrb[0].mxu0
  %v119 = vadd.f32 %v34, %v118
  %v120 = vpop.f32.mrb[0].mxu0
  %121 = vdwg.mxu0
  %vm122 = vcmp.gt.f32.partialorder %v114, 0.0
  %vm123 = vcmp.gt.f32.partialorder %v119, 0.0
  %v124 = vmin.f32 %v114, 0.0
  %v125 = vmin.f32 %v119, 0.0
  %v126 = vmul.f32 %v124, 1.442695
  %v127 = vpow.pop %v126
  %v128 = vmul.f32 %v125, 1.442695
  %v129 = vpow.pop %v128
  %v130 = vsub.f32 %v127, 1.0
  %v131 = vsub.f32 %v129, 1.0
  %v132 = vsel %vm122, %v114, %v130
  %v133 = vsel %vm123, %v119, %v131
  %v134 = vld [vmem:[%s3] sm:$0xff]
  %v135 = vld [vmem:[%s3 + $0x8] sm:$0xff]
  %v136 = vld [vmem:[%s3 + $0x10] sm:$0xff]
  %v137 = vld [vmem:[%s3 + $0x18] sm:$0xff]
  %v138 = vld [vmem:[%s3 + $0x20] sm:$0xff]
  %v139 = vld [vmem:[%s3 + $0x28] sm:$0xff]
  %v140 = vld [vmem:[%s3 + $0x30] sm:$0xff]
  %v141 = vld [vmem:[%s3 + $0x38] sm:$0xff]
  %v142 = vld [vmem:[%s3 + $0x40] sm:$0xff]
  %v143 = vld [vmem:[%s3 + $0x48] sm:$0xff]
  %v144 = vld [vmem:[%s3 + $0x50] sm:$0xff]
  %v145 = vld [vmem:[%s3 + $0x58] sm:$0xff]
  %v146 = vld [vmem:[%s3 + $0x60] sm:$0xff]
  %v147 = vld [vmem:[%s3 + $0x68] sm:$0xff]
  %v148 = vld [vmem:[%s3 + $0x70] sm:$0xff]
  %v149 = vld [vmem:[%s3 + $0x78] sm:$0xff]
  %v150 = vld [vmem:[%s4] sm:$0x1]
  %v152 = vlaneseq
  %v153 = vshrl.u32 %v152, 7
  %v154 = vsub.s32 0, %v153
  %v155 = vrot.slane %v150, %v154
  %157 = vmatprep.subr.mxu0 0.0
  %158 = vmatpush1.msra.mxu0 %v134
  %159 = vmatprep.subr.mxu0 0.0
  %160 = vmatpush1.msra.mxu0 %v135
  %161 = vmatprep.subr.mxu0 0.0
  %162 = vmatpush1.msra.mxu0 %v136
  %163 = vmatprep.subr.mxu0 0.0
  %164 = vmatpush1.msra.mxu0 %v137
  %165 = vmatprep.subr.mxu0 0.0
  %166 = vmatpush1.msra.mxu0 %v138
  %167 = vmatprep.subr.mxu0 0.0
  %168 = vmatpush1.msra.mxu0 %v139
  %169 = vmatprep.subr.mxu0 0.0
  %170 = vmatpush1.msra.mxu0 %v140
  %171 = vmatprep.subr.mxu0 0.0
  %172 = vmatpush1.msra.mxu0 %v141
  %173 = vmatprep.subr.mxu0 0.0
  %174 = vmatpush1.msra.mxu0 %v142
  %175 = vmatprep.subr.mxu0 0.0
  %176 = vmatpush1.msra.mxu0 %v143
  %177 = vmatprep.subr.mxu0 0.0
  %178 = vmatpush1.msra.mxu0 %v144
  %179 = vmatprep.subr.mxu0 0.0
  %180 = vmatpush1.msra.mxu0 %v145
  %181 = vmatprep.subr.mxu0 0.0
  %182 = vmatpush1.msra.mxu0 %v146
  %183 = vmatprep.subr.mxu0 0.0
  %184 = vmatpush1.msra.mxu0 %v147
  %185 = vmatprep.subr.mxu0 0.0
  %186 = vmatpush1.msra.mxu0 %v148
  %187 = vmatprep.subr.mxu0 0.0
  %188 = vmatpush1.msra.mxu0 %v149
  %189 = vmatprep.subr.mxu0 0.0
  %190 = vmatpush1.msra.mxu0 0.0
  %191 = vmatprep.subr.mxu0 0.0
  %192 = vmatpush1.msra.mxu0 0.0
  %193 = vmatprep.subr.mxu0 0.0
  %194 = vmatpush1.msra.mxu0 0.0
  %195 = vmatprep.subr.mxu0 0.0
  %196 = vmatpush1.msra.mxu0 0.0
  %197 = vmatprep.subr.mxu0 0.0
  %198 = vmatpush1.msra.mxu0 0.0
  %199 = vmatprep.subr.mxu0 0.0
  %200 = vmatpush1.msra.mxu0 0.0
  %201 = vmatprep.subr.mxu0 0.0
  %202 = vmatpush1.msra.mxu0 0.0
  %203 = vmatprep.subr.mxu0 0.0
  %204 = vmatpush1.msra.mxu0 0.0
  %205 = vmatprep.subr.mxu0 0.0
  %206 = vmatpush1.msra.mxu0 0.0
  %207 = vmatprep.subr.mxu0 0.0
  %208 = vmatpush1.msra.mxu0 0.0
  %209 = vmatprep.subr.mxu0 0.0
  %210 = vmatpush1.msra.mxu0 0.0
  %211 = vmatprep.subr.mxu0 0.0
  %212 = vmatpush1.msra.mxu0 0.0
  %213 = vmatprep.subr.mxu0 0.0
  %214 = vmatpush1.msra.mxu0 0.0
  %215 = vmatprep.subr.mxu0 0.0
  %216 = vmatpush1.msra.mxu0 0.0
  %217 = vmatprep.subr.mxu0 0.0
  %218 = vmatpush1.msra.mxu0 0.0
  %219 = vmatprep.subr.mxu0 0.0
  %220 = vmatpush1.msra.mxu0 0.0
  %221 = vmatprep.mubr.f32.mxu0 0.0
  %222 = vmatmul.mubr.f32.gmra.mrb[0].mxu0 %v132
  %v223 = vpop.f32.mrb[0].mxu0
  %v224 = vadd.f32 %v155, %v223
  %v225 = vpop.f32.mrb[0].mxu0
  %226 = vmatprep.mubr.f32.mxu0 0.0
  %227 = vmatmul.mubr.f32.gmra.mrb[0].mxu0 %v133
  %v228 = vpop.f32.mrb[0].mxu0
  %v229 = vadd.f32 %v155, %v228
  %v230 = vpop.f32.mrb[0].mxu0
  %231 = vdwg.mxu0
  %vm232 = vcmp.gt.f32.partialorder %v224, 0.0
  %vm233 = vcmp.gt.f32.partialorder %v229, 0.0
  %v234 = vmin.f32 %v224, 0.0
  %v235 = vmin.f32 %v229, 0.0
  %v236 = vmul.f32 %v234, 1.442695
  %v237 = vpow.pop %v236
  %v238 = vmul.f32 %v235, 1.442695
  %v239 = vpow.pop %v238
  %v240 = vsub.f32 %v237, 1.0
  %v241 = vsub.f32 %v239, 1.0
  %v242 = vsel %vm232, %v224, %v240
  %v243 = vsel %vm233, %v229, %v241
  %v244 = vld [vmem:[%s5] sm:$0xff]
  %v245 = vld [vmem:[%s5 + $0x8] sm:$0xff]
  %v246 = vld [vmem:[%s5 + $0x10] sm:$0xff]
  %v247 = vld [vmem:[%s5 + $0x18] sm:$0xff]
  %v248 = vld [vmem:[%s5 + $0x20] sm:$0xff]
  %v249 = vld [vmem:[%s5 + $0x28] sm:$0xff]
  %v250 = vld [vmem:[%s5 + $0x30] sm:$0xff]
  %v251 = vld [vmem:[%s5 + $0x38] sm:$0xff]
  %v252 = vld [vmem:[%s5 + $0x40] sm:$0xff]
  %v253 = vld [vmem:[%s5 + $0x48] sm:$0xff]
  %v254 = vld [vmem:[%s5 + $0x50] sm:$0xff]
  %v255 = vld [vmem:[%s5 + $0x58] sm:$0xff]
  %v256 = vld [vmem:[%s5 + $0x60] sm:$0xff]
  %v257 = vld [vmem:[%s5 + $0x68] sm:$0xff]
  %v258 = vld [vmem:[%s5 + $0x70] sm:$0xff]
  %v259 = vld [vmem:[%s5 + $0x78] sm:$0xff]
  %v260 = vld [vmem:[%s6] sm:$0x1]
  %v262 = vlaneseq
  %v263 = vshrl.u32 %v262, 7
  %v264 = vsub.s32 0, %v263
  %v265 = vrot.slane %v260, %v264
  %267 = vmatprep.subr.mxu0 0.0
  %268 = vmatpush1.msra.mxu0 %v244
  %269 = vmatprep.subr.mxu0 0.0
  %270 = vmatpush1.msra.mxu0 %v245
  %271 = vmatprep.subr.mxu0 0.0
  %272 = vmatpush1.msra.mxu0 %v246
  %273 = vmatprep.subr.mxu0 0.0
  %274 = vmatpush1.msra.mxu0 %v247
  %275 = vmatprep.subr.mxu0 0.0
  %276 = vmatpush1.msra.mxu0 %v248
  %277 = vmatprep.subr.mxu0 0.0
  %278 = vmatpush1.msra.mxu0 %v249
  %279 = vmatprep.subr.mxu0 0.0
  %280 = vmatpush1.msra.mxu0 %v250
  %281 = vmatprep.subr.mxu0 0.0
  %282 = vmatpush1.msra.mxu0 %v251
  %283 = vmatprep.subr.mxu0 0.0
  %284 = vmatpush1.msra.mxu0 %v252
  %285 = vmatprep.subr.mxu0 0.0
  %286 = vmatpush1.msra.mxu0 %v253
  %287 = vmatprep.subr.mxu0 0.0
  %288 = vmatpush1.msra.mxu0 %v254
  %289 = vmatprep.subr.mxu0 0.0
  %290 = vmatpush1.msra.mxu0 %v255
  %291 = vmatprep.subr.mxu0 0.0
  %292 = vmatpush1.msra.mxu0 %v256
  %293 = vmatprep.subr.mxu0 0.0
  %294 = vmatpush1.msra.mxu0 %v257
  %295 = vmatprep.subr.mxu0 0.0
  %296 = vmatpush1.msra.mxu0 %v258
  %297 = vmatprep.subr.mxu0 0.0
  %298 = vmatpush1.msra.mxu0 %v259
  %299 = vmatprep.subr.mxu0 0.0
  %300 = vmatpush1.msra.mxu0 0.0
  %301 = vmatprep.subr.mxu0 0.0
  %302 = vmatpush1.msra.mxu0 0.0
  %303 = vmatprep.subr.mxu0 0.0
  %304 = vmatpush1.msra.mxu0 0.0
  %305 = vmatprep.subr.mxu0 0.0
  %306 = vmatpush1.msra.mxu0 0.0
  %307 = vmatprep.subr.mxu0 0.0
  %308 = vmatpush1.msra.mxu0 0.0
  %309 = vmatprep.subr.mxu0 0.0
  %310 = vmatpush1.msra.mxu0 0.0
  %311 = vmatprep.subr.mxu0 0.0
  %312 = vmatpush1.msra.mxu0 0.0
  %313 = vmatprep.subr.mxu0 0.0
  %314 = vmatpush1.msra.mxu0 0.0
  %315 = vmatprep.subr.mxu0 0.0
  %316 = vmatpush1.msra.mxu0 0.0
  %317 = vmatprep.subr.mxu0 0.0
  %318 = vmatpush1.msra.mxu0 0.0
  %319 = vmatprep.subr.mxu0 0.0
  %320 = vmatpush1.msra.mxu0 0.0
  %321 = vmatprep.subr.mxu0 0.0
  %322 = vmatpush1.msra.mxu0 0.0
  %323 = vmatprep.subr.mxu0 0.0
  %324 = vmatpush1.msra.mxu0 0.0
  %325 = vmatprep.subr.mxu0 0.0
  %326 = vmatpush1.msra.mxu0 0.0
  %327 = vmatprep.subr.mxu0 0.0
  %328 = vmatpush1.msra.mxu0 0.0
  %329 = vmatprep.subr.mxu0 0.0
  %330 = vmatpush1.msra.mxu0 0.0
  %331 = vmatprep.mubr.f32.mxu0 0.0
  %332 = vmatmul.mubr.f32.gmra.mrb[0].mxu0 %v242
  %v333 = vpop.f32.mrb[0].mxu0
  %v334 = vadd.f32 %v265, %v333
  %v335 = vpop.f32.mrb[0].mxu0
  %336 = vmatprep.mubr.f32.mxu0 0.0
  %337 = vmatmul.mubr.f32.gmra.mrb[0].mxu0 %v243
  %v338 = vpop.f32.mrb[0].mxu0
  %v339 = vadd.f32 %v265, %v338
  %v340 = vpop.f32.mrb[0].mxu0
  %341 = vdwg.mxu0
  %342 = vst [vmem:[%s7] sm:$0xff] %v334
  %343 = vst [vmem:[%s7 + $0x8] sm:$0xff] %v339
  // Predicated region
  $region30: #{mlp_forward.1} parent=0 // pred_check
    _
  $region31: #{mlp_forward.1} parent=0 // pred_check_branch
    %345 = sbr.rel (0) target = $region33
  $region32: #{mlp_forward.1} parent=0 // pred_region
    _
  $region33: #{mlp_forward.1} parent=0 // pred_fallthru
    _
  // Predicated region
  $region34: #{mlp_forward.1} parent=0 // pred_check
    _
  $region35: #{mlp_forward.1} parent=0 // pred_check_branch
    %347 = sbr.rel (0) target = $region37
  $region36: #{mlp_forward.1} parent=0 // pred_region
    _
  $region37: #{mlp_forward.1} parent=0 // pred_fallthru
    _

</llo_original>
